<compile_context>
chip_gen: v6e
topology: v6e:2x2x1
jax: 0.10.0
libtpu: 0.0.40
codegen_flags: <defaults>
</compile_context>

<pallas_src>
import jax
import jax.numpy as jnp
from jax.experimental import pallas as pl
from jax.experimental.pallas import tpu as pltpu

_LANES = 128
_SUBLANES = 8
_NEG_PAD = -1e4  # exp(-|_NEG_PAD|) underflows to 0 -> padded elements add exactly 0


def _bce_with_logits(x, lab):
    # lab*softplus(-x) + (1-lab)*softplus(x) == max(x,0) - lab*x + log(1+exp(-|x|))
    return jnp.maximum(x, 0.0) - lab * x + jnp.log(1.0 + jnp.exp(-jnp.abs(x)))


def _cel_kernel_flat(x_ref, lab_ref, out_ref):
    """Lane-dense flattened path. out_ref: (1, 8, 128) resident partial sum."""
    @pl.when(pl.program_id(1) == 0)
    def _():
        out_ref[...] = jnp.zeros_like(out_ref)

    x = x_ref[...].astype(jnp.float32)      # [block_rows, 128]
    lab = lab_ref[...].astype(jnp.float32)  # [block_rows, 128]
    contrib = _bce_with_logits(x, lab)
    # Fold sublane-tile groups with VPU-only adds; no cross-lane reduce here.
    out_ref[...] += contrib.reshape(-1, _SUBLANES, _LANES).sum(axis=0)[None]
    # TODO(synk): the torch.isnan(cel_sum) + pdb.set_trace() branch is
    # host-side debugging only and has no Pallas equivalent.


def _cel_kernel_2d(x_ref, lab_ref, out_ref):
    """Native [B, C] layout path (C % 128 == 0). out_ref: (8, C) partial sum."""
    @pl.when(pl.program_id(0) == 0)
    def _():
        out_ref[...] = jnp.zeros_like(out_ref)

    x = x_ref[...].astype(jnp.float32)      # [block_B, C]
    lab = lab_ref[...].astype(jnp.float32)  # [block_B, C]
    contrib = _bce_with_logits(x, lab)
    out_ref[...] += contrib.reshape(-1, _SUBLANES, x.shape[-1]).sum(axis=0)


def _cel_flat(output, labels, B, C):
    """Universal path: slice/flatten/pad to a lane-dense [rows, 128] slab."""
    n = B * C
    x = output[:, :C].reshape(-1)                  # only DMA the used columns
    lab = labels.reshape(-1).astype(jnp.bfloat16)  # 0/1 exact; halves label DMA

    rows = -(-n // _LANES)                                   # ceil(n / 128)
    rows = ((rows + _SUBLANES - 1) // _SUBLANES) * _SUBLANES  # sublane multiple
    # Block rows: up to 2048 (1 MiB f32 tile), but no bigger than ~half the
    # data so the 2-way core split does not force a full extra block of pad.
    block_rows = max(_SUBLANES, min(2048, -(-rows // 16) * _SUBLANES))
    blocks = -(-rows // block_rows)
    blocks = ((blocks + 1) // 2) * 2               # even -> split across 2 TCs
    rows_padded = blocks * block_rows
    pad = rows_padded * _LANES - n
    x = jnp.pad(x, (0, pad), constant_values=_NEG_PAD).reshape(rows_padded, _LANES)
    lab = jnp.pad(lab, (0, pad), constant_values=0).reshape(rows_padded, _LANES)

    nb = blocks // 2
    idx = lambda c, i: (c * nb + i, 0)

    res = pl.pallas_call(
        _cel_kernel_flat,
        out_shape=jax.ShapeDtypeStruct((2, _SUBLANES, _LANES), jnp.float32),
        grid_spec=pltpu.PrefetchScalarGridSpec(
            num_scalar_prefetch=0,
            grid=(2, nb),
            in_specs=[pl.BlockSpec((block_rows, _LANES), idx),
                      pl.BlockSpec((block_rows, _LANES), idx)],
            out_specs=pl.BlockSpec((1, _SUBLANES, _LANES), lambda c, i: (c, 0, 0)),
        ),
        compiler_params=pltpu.CompilerParams(
            dimension_semantics=("parallel", "arbitrary")),
    )(x, lab)
    return jnp.sum(res) * (1.0 / n)


def _cel_2d(output, labels, B, C):
    """Fast path: no wrapper pre-pass; reads [B, C] (first C cols of output)."""
    n = B * C
    itemsize = max(jnp.dtype(output.dtype).itemsize,
                   jnp.dtype(labels.dtype).itemsize)
    budget = 1 << 20  # ~1 MiB per input tile (safe under all scoped-VMEM defaults)
    max_rows = min(B, (budget // (itemsize * C)) // _SUBLANES * _SUBLANES)
    if max_rows < _SUBLANES:
        return None
    block_B = None
    for r in range(max_rows, _SUBLANES - 1, -_SUBLANES):
        if B % r == 0:
            block_B = r
            break
    if block_B is None:
        return None
    # TODO(synk): this path keeps a single "arbitrary" reduction axis; a
    # 2-core split like the flatten path could be added for v7x.
    res = pl.pallas_call(
        _cel_kernel_2d,
        out_shape=jax.ShapeDtypeStruct((_SUBLANES, C), jnp.float32),
        grid_spec=pltpu.PrefetchScalarGridSpec(
            num_scalar_prefetch=0,
            grid=(B // block_B,),
            in_specs=[pl.BlockSpec((block_B, C), lambda i: (i, 0)),
                      pl.BlockSpec((block_B, C), lambda i: (i, 0))],
            out_specs=pl.BlockSpec((_SUBLANES, C), lambda i: (0, 0)),
        ),
        compiler_params=pltpu.CompilerParams(
            dimension_semantics=("arbitrary",)),
    )(output, labels)
    return jnp.sum(res) * (1.0 / n)


def cel_loss(output, labels):
    """Mirrors CEL.forward: returns (cel_sum, cel_sum) as f32 scalars."""
    assert output.ndim == 2 and labels.ndim == 2
    B, C = labels.shape
    assert output.shape[0] == B and output.shape[1] >= C

    cel = None
    if C % _LANES == 0 and B % _SUBLANES == 0:
        cel = _cel_2d(output, labels, B, C)
    if cel is None:
        cel = _cel_flat(output, labels, B, C)
    return cel, cel


def _reference(output, labels, eps=1e-32):
    """Pure-JAX mirror of the PyTorch CEL.forward (for sanity checking)."""
    B, C = labels.shape
    outs = jax.nn.sigmoid(output[:, :C].astype(jnp.float32))
    lab = labels.astype(jnp.float32)
    pos_loss = lab * jnp.log(outs + eps)
    neg_loss = (1.0 - lab) * jnp.log(1.0 - outs + eps)
    cel = -jnp.mean(pos_loss) - jnp.mean(neg_loss)
    return cel, cel


if __name__ == "__main__":
    key = jax.random.PRNGKey(0)
    k1, k2, k3, k4 = jax.random.split(key, 4)

    # Case 1: small C with extra logit columns -> flattened lane-dense path.
    B, C_out, C = 8, 6, 4
    output = jax.random.normal(k1, (B, C_out), dtype=jnp.float32)
    labels = (jax.random.uniform(k2, (B, C)) > 0.5).astype(jnp.float32)

    cel, cel_dup = cel_loss(output, labels)
    jax.block_until_ready((cel, cel_dup))
    ref, _ = _reference(output, labels)
    assert jnp.allclose(cel, ref, atol=1e-5, rtol=1e-5), (cel, ref)
    assert jnp.allclose(cel_dup, ref, atol=1e-5, rtol=1e-5), (cel_dup, ref)

    # Case 2: lane-aligned C -> native-layout path (no wrapper pre-pass).
    B2, C2_out, C2 = 16, 256, 128
    output2 = jax.random.normal(k3, (B2, C2_out), dtype=jnp.float32)
    labels2 = (jax.random.uniform(k4, (B2, C2)) > 0.5).astype(jnp.float32)

    cel2, _ = cel_loss(output2, labels2)
    jax.block_until_ready(cel2)
    ref2, _ = _reference(output2, labels2)
    assert jnp.allclose(cel2, ref2, atol=1e-5, rtol=1e-5), (cel2, ref2)

    print("KERNEL_OK")
</pallas_src>

<mosaic_0001>
module attributes {stable_mosaic.version = 11 : i64} {
  func.func @_cel_kernel_flat(%arg0: i32, %arg1: i32, %arg2: memref<8x128xf32, #tpu.memory_space<vmem>>, %arg3: memref<8x128xbf16, #tpu.memory_space<vmem>>, %arg4: memref<1x8x128xf32, #tpu.memory_space<vmem>>) attributes {dimension_semantics = [#tpu.dimension_semantics<parallel>, #tpu.dimension_semantics<arbitrary>], iteration_bounds = array<i64: 2, 1>, scalar_prefetch = 0 : i64, scratch_operands = 0 : i64, tpu.core_type = #tpu.core_type<tc>, window_params = [{transform_indices = @transform_0, window_bounds = array<i64: 8, 128>}, {transform_indices = @transform_1, window_bounds = array<i64: 8, 128>}, {transform_indices = @transform_2, window_bounds = array<i64: 1, 8, 128>}]} {
    %c0_i32 = arith.constant 0 : i32
    %0 = arith.cmpi eq, %arg1, %c0_i32 : i32
    %1 = arith.extui %0 : i1 to i32
    %c0_i32_0 = arith.constant 0 : i32
    %2 = arith.cmpi ne, %1, %c0_i32_0 : i32
    scf.if %2 {
      %cst_13 = arith.constant 0.000000e+00 : f32
      %24 = vector.broadcast %cst_13 : f32 to vector<1x8x128xf32>
      %c0_14 = arith.constant 0 : index
      %c0_15 = arith.constant 0 : index
      %c0_16 = arith.constant 0 : index
      %25 = vector.load %arg4[%c0_14, %c0_15, %c0_16] : memref<1x8x128xf32, #tpu.memory_space<vmem>>, vector<1x8x128xf32>
      tpu.vector_store %arg4[%c0_14, %c0_15, %c0_16], %24 {strides = array<i32>} : memref<1x8x128xf32, #tpu.memory_space<vmem>>, vector<1x8x128xf32>,
    } else {
    }
    %c0 = arith.constant 0 : index
    %c0_1 = arith.constant 0 : index
    %3 = vector.load %arg2[%c0, %c0_1] : memref<8x128xf32, #tpu.memory_space<vmem>>, vector<8x128xf32>
    %c0_2 = arith.constant 0 : index
    %c0_3 = arith.constant 0 : index
    %4 = vector.load %arg3[%c0_2, %c0_3] : memref<8x128xbf16, #tpu.memory_space<vmem>>, vector<8x128xbf16>
    %5 = arith.extf %4 : vector<8x128xbf16> to vector<8x128xf32>
    %cst = arith.constant 0.000000e+00 : f32
    %6 = vector.broadcast %cst : f32 to vector<8x128xf32>
    %7 = arith.maximumf %3, %6 : vector<8x128xf32>
    %8 = arith.mulf %5, %3 : vector<8x128xf32>
    %9 = arith.subf %7, %8 : vector<8x128xf32>
    %10 = math.absf %3 : vector<8x128xf32>
    %cst_4 = arith.constant 0.000000e+00 : f32
    %11 = vector.broadcast %cst_4 : f32 to vector<8x128xf32>
    %12 = arith.subf %11, %10 : vector<8x128xf32>
    %13 = math.exp %12 : vector<8x128xf32>
    %cst_5 = arith.constant 1.000000e+00 : f32
    %14 = vector.broadcast %cst_5 : f32 to vector<8x128xf32>
    %15 = arith.addf %14, %13 : vector<8x128xf32>
    %16 = math.log %15 : vector<8x128xf32>
    %17 = arith.addf %9, %16 : vector<8x128xf32>
    %c0_6 = arith.constant 0 : index
    %c0_7 = arith.constant 0 : index
    %c0_8 = arith.constant 0 : index
    %18 = vector.load %arg4[%c0_6, %c0_7, %c0_8] : memref<1x8x128xf32, #tpu.memory_space<vmem>>, vector<1x8x128xf32>
    %19 = vector.shape_cast %17 : vector<8x128xf32> to vector<1x8x128xf32>
    %cst_9 = arith.constant dense<0.000000e+00> : vector<8x128xf32>
    %20 = vector.multi_reduction <add>, %19, %cst_9 [0] : vector<1x8x128xf32> to vector<8x128xf32>
    %21 = vector.shape_cast %20 : vector<8x128xf32> to vector<1x8x128xf32>
    %22 = arith.addf %18, %21 : vector<1x8x128xf32>
    %c0_10 = arith.constant 0 : index
    %c0_11 = arith.constant 0 : index
    %c0_12 = arith.constant 0 : index
    %23 = vector.load %arg4[%c0_10, %c0_11, %c0_12] : memref<1x8x128xf32, #tpu.memory_space<vmem>>, vector<1x8x128xf32>
    tpu.vector_store %arg4[%c0_10, %c0_11, %c0_12], %22 {strides = array<i32>} : memref<1x8x128xf32, #tpu.memory_space<vmem>>, vector<1x8x128xf32>,
    return
  }
  func.func @transform_0(%arg0: i32, %arg1: i32) -> (i32, i32) {
    %c1_i32 = arith.constant 1 : i32
    %0 = arith.muli %arg0, %c1_i32 : i32
    %1 = arith.addi %0, %arg1 : i32
    %c0_i32 = arith.constant 0 : i32
    %c0_i32_0 = arith.constant 0 : i32
    return %1, %c0_i32 : i32, i32
  }
  func.func @transform_1(%arg0: i32, %arg1: i32) -> (i32, i32) {
    %c1_i32 = arith.constant 1 : i32
    %0 = arith.muli %arg0, %c1_i32 : i32
    %1 = arith.addi %0, %arg1 : i32
    %c0_i32 = arith.constant 0 : i32
    %c0_i32_0 = arith.constant 0 : i32
    return %1, %c0_i32 : i32, i32
  }
  func.func @transform_2(%arg0: i32, %arg1: i32) -> (i32, i32, i32) {
    %c0_i32 = arith.constant 0 : i32
    %c0_i32_0 = arith.constant 0 : i32
    %c0_i32_1 = arith.constant 0 : i32
    return %arg0, %c0_i32, %c0_i32_0 : i32, i32, i32
  }
}

</mosaic_0001>

<llo_original>
// kernel: tpu_custom_call.1
$region0: #{tpu_custom_call.1}
  #allocation0 [shape = 'u32[]', space=smem, size = 0x4, offset = 0x4, fixed_abs, tag = 'smem constant byte address 0x4 - core index']
  #allocation1 [shape = 'u32[144,128]{1,0:T(1,128)}', space=vmem, size = 0x12000, scoped, tag = 'internal scratch']
  %s0 = inlined_call_operand.hbm [shape: f32[16,128], index: 0, kind: input, shape index: {}]
  %s1 = inlined_call_operand.hbm [shape: bf16[16,128], index: 1, kind: input, shape index: {}]
  %s2 = inlined_call_operand.hbm [shape: f32[2,8,128], index: 2, kind: output, shape index: {}]
  %s3 = sld [smem:[#allocation0]]
  $region53: #{tpu_custom_call.1} parent=0
    _
  %s5 = ssub.s32 1, %s3
  %s6 = scalar_select 0, %s5, %s3
  $region1: #{tpu_custom_call.1} parent=0
    #allocation2 [shape = 'u8[8192]{0}', space=vmem, size = 0x2000, scoped, tag = 'input window, operand 0']
    #allocation3 [shape = 's32[2]{0}', space=sflag, size = 0x8, scoped, tag = 'scoped memory for tpu_custom_call.1']
    #allocation4 [shape = 's32[2]{0}', space=sflag, size = 0x8, scoped, tag = 'scoped memory for tpu_custom_call.1']
    #allocation5 [shape = 'u8[4096]{0}', space=vmem, size = 0x1000, scoped, tag = 'input window, operand 1']
    #allocation6 [shape = 's32[2]{0}', space=sflag, size = 0x8, scoped, tag = 'scoped memory for tpu_custom_call.1']
    #allocation7 [shape = 'u8[8192]{0}', space=vmem, size = 0x2000, scoped, tag = 'output window, operand 0']
    %7 = vsyncpa [#allocation3], 0
    %s8 = scalar_lea.sflag [#allocation3], 1
    %9 = vsyncpa %s8, 0
    %10 = vsyncpa [#allocation6], 0
    %s11 = scalar_lea.sflag [#allocation6], 1
    %12 = vsyncpa %s11, 0
    %13 = vsyncpa [#allocation4], 0
    %s14 = scalar_lea.sflag [#allocation4], 1
    %15 = vsyncpa %s14, 0
    loop: start=0, step=1, limit=4
    $region2: #{tpu_custom_call.1} parent=1 // loop_pre_header
      _
    $region3: #{tpu_custom_call.1} parent=1 // loop_header
      %s17 = sphi 0, %s21
      %p18 = scmp.ge.s32.totalorder %s17, 4
      %s24 = sphi 0, %s36
      %s25 = sphi 0, %s32
      %s26 = sphi 0, %s24
      %s27 = sphi 0, %s25
      %s28 = sphi 0, %s26
      %s29 = sphi 0, %s27
      %s41 = sphi 0, %s43
      %s44 = sphi 0, %s41
      %s45 = sphi 0, %s44
      %s61 = sphi 0, %s45
      %s69 = sphi 0, %s71
      %s72 = sphi 0, %s69
      %s73 = sphi 0, %s72
      %s89 = sphi 0, %s73
      %s95 = sphi 0, %s97
      %s98 = sphi 0, %s95
      %s99 = sphi 0, %s98
      %s115 = sphi 0, %s99
    $region4: #{tpu_custom_call.1} parent=1 // loop_header_branch
      %20 = sbr.rel (%p18) target = $region8
    $region5: #{tpu_custom_call.1} parent=1 // loop_body
      %s22 = ssub.s32 %s17, 1
      %s23 = ssub.s32 %s17, 2
      %s30 = sadd.s32 1, %s25
      %p31 = scmp.ge.s32.totalorder %s30, 1
      %s32 = scalar_select %p31, 0, %s30
      %s33 = sadd.s32 1, %s24
      %s34 = scalar_select %p31, %s33, %s24
      %p35 = scmp.ge.s32.totalorder %s34, 2
      %s36 = scalar_select %p35, 0, %s34
      %s37 = sadd.s32 %s24, %s25
      %s38 = sadd.s32 %s36, %s32
      %s39 = ssub.s32 %s37, %s38
      %p40 = scmp.eq.s32.totalorder %s39, 0
      %s42 = sadd.s32 %s41, 1
      %s43 = scalar_select %p40, %s41, %s42
      %p46 = pneg %p40
      %p47 = scmp.eq.s32.totalorder %s17, 1
      %p48 = por %p46, %p47
      %p49 = scmp.ne.s32.totalorder %s41, %s44
      %p50 = scmp.eq.s32.totalorder %s17, 0
      %p51 = por %p49, %p50
      %p52 = scmp.ne.s32.totalorder %s41, %s44
      %p53 = scmp.eq.s32.totalorder %s22, 1
      %p54 = por %p52, %p53
      %p55 = scmp.ne.s32.totalorder %s44, %s45
      %p56 = scmp.eq.s32.totalorder %s22, 0
      %p57 = por %p55, %p56
      %p58 = scmp.ne.s32.totalorder %s44, %s45
      %p59 = scmp.eq.s32.totalorder %s23, 1
      %p60 = por %p58, %p59
      %p62 = scmp.ne.s32.totalorder %s45, %s61
      %p63 = scmp.eq.s32.totalorder %s23, 0
      %p64 = por %p62, %p63
      %s65 = sadd.s32 %s24, %s25
      %s66 = sadd.s32 %s36, %s32
      %s67 = ssub.s32 %s65, %s66
      %p68 = scmp.eq.s32.totalorder %s67, 0
      %s70 = sadd.s32 %s69, 1
      %s71 = scalar_select %p68, %s69, %s70
      %p74 = pneg %p68
      %p75 = scmp.eq.s32.totalorder %s17, 1
      %p76 = por %p74, %p75
      %p77 = scmp.ne.s32.totalorder %s69, %s72
      %p78 = scmp.eq.s32.totalorder %s17, 0
      %p79 = por %p77, %p78
      %p80 = scmp.ne.s32.totalorder %s69, %s72
      %p81 = scmp.eq.s32.totalorder %s22, 1
      %p82 = por %p80, %p81
      %p83 = scmp.ne.s32.totalorder %s72, %s73
      %p84 = scmp.eq.s32.totalorder %s22, 0
      %p85 = por %p83, %p84
      %p86 = scmp.ne.s32.totalorder %s72, %s73
      %p87 = scmp.eq.s32.totalorder %s23, 1
      %p88 = por %p86, %p87
      %p90 = scmp.ne.s32.totalorder %s73, %s89
      %p91 = scmp.eq.s32.totalorder %s23, 0
      %p92 = por %p90, %p91
      %s93 = ssub.s32 %s24, %s36
      %p94 = scmp.eq.s32.totalorder %s93, 0
      %s96 = sadd.s32 %s95, 1
      %s97 = scalar_select %p94, %s95, %s96
      %p100 = pneg %p94
      %p101 = scmp.eq.s32.totalorder %s17, 1
      %p102 = por %p100, %p101
      %p103 = scmp.ne.s32.totalorder %s95, %s98
      %p104 = scmp.eq.s32.totalorder %s17, 0
      %p105 = por %p103, %p104
      %p106 = scmp.ne.s32.totalorder %s95, %s98
      %p107 = scmp.eq.s32.totalorder %s22, 1
      %p108 = por %p106, %p107
      %p109 = scmp.ne.s32.totalorder %s98, %s99
      %p110 = scmp.eq.s32.totalorder %s22, 0
      %p111 = por %p109, %p110
      %p112 = scmp.ne.s32.totalorder %s98, %s99
      %p113 = scmp.eq.s32.totalorder %s23, 1
      %p114 = por %p112, %p113
      %p116 = scmp.ne.s32.totalorder %s99, %s115
      %p117 = scmp.eq.s32.totalorder %s23, 0
      %p118 = por %p116, %p117
      %p119 = scmp.le.s32.totalorder 1, %s17
      %p120 = scmp.lt.s32.totalorder %s17, 3
      %p121 = pnand %p119, %p120
      %p122 = pneg %p121
      // Predicated region
      $region9: #{tpu_custom_call.1} parent=5 // pred_check
        _
      $region10: #{tpu_custom_call.1} parent=5 // pred_check_branch
        %124 = sbr.rel (%p121) target = $region12
      $region11: #{tpu_custom_call.1} parent=5 // pred_region
        %s125 = ssub.s32 %s17, 1
      $region12: #{tpu_custom_call.1} parent=5 // pred_fallthru
        _
      %p126 = scmp.lt.s32.totalorder %s17, 2
      // Predicated region
      $region13: #{tpu_custom_call.1} parent=5 // pred_check
        %p127 = pneg %p126
      $region14: #{tpu_custom_call.1} parent=5 // pred_check_branch
        %129 = sbr.rel (%p127) target = $region16
      $region15: #{tpu_custom_call.1} parent=5 // pred_region
        // Predicated region
        $region17: #{tpu_custom_call.1} parent=15 // pred_check
          %p130 = pneg %p51
        $region18: #{tpu_custom_call.1} parent=15 // pred_check_branch
          %132 = sbr.rel (%p130) target = $region20
        $region19: #{tpu_custom_call.1} parent=15 // pred_region
          %s133 = sand.u32 %s41, 1
          %s134 = scalar_lea.sflag [#allocation3], %s133
          %s135 = sand.u32 %s41, 1
          %s136 = smul.addr %s135, 8
          %s137 = scalar_lea.vmem [#allocation2], %s136
          %s138 = sadd.s32 %s24, %s25
          %s140 = ssub.s32 128, 128
          %141 = vsyncadd %s134, %s140
          %s142 = smul.addr %s138, 128
          %s143 = scalar_lea.hbm %s0, %s142
          %s145 = sshll.u32 %s137, 4
          %s146 = int_to_ptr.vmem [resolvable:$true] %s145
          %148 = dma.hbm_to_vmem [thread:$0]  %s143, 128, %s146, %s134
        $region20: #{tpu_custom_call.1} parent=15 // pred_fallthru
          _
        // Predicated region
        $region21: #{tpu_custom_call.1} parent=15 // pred_check
          %p149 = pneg %p79
        $region22: #{tpu_custom_call.1} parent=15 // pred_check_branch
          %151 = sbr.rel (%p149) target = $region24
        $region23: #{tpu_custom_call.1} parent=15 // pred_region
          %s152 = sand.u32 %s69, 1
          %s153 = scalar_lea.sflag [#allocation6], %s152
          %s154 = sand.u32 %s69, 1
          %s155 = smul.addr %s154, 4
          %s156 = scalar_lea.vmem [#allocation5], %s155
          %s157 = sadd.s32 %s24, %s25
          %s159 = ssub.s32 64, 64
          %160 = vsyncadd %s153, %s159
          %s161 = smul.addr %s157, 64
          %s162 = scalar_lea.hbm %s1, %s161
          %s164 = sshll.u32 %s156, 4
          %s165 = int_to_ptr.vmem [resolvable:$true] %s164
          %167 = dma.hbm_to_vmem [thread:$0]  %s162, 64, %s165, %s153
        $region24: #{tpu_custom_call.1} parent=15 // pred_fallthru
          _
      $region16: #{tpu_custom_call.1} parent=5 // pred_fallthru
        _
      %p168 = scmp.le.s32.totalorder 1, %s17
      %p169 = scmp.lt.s32.totalorder %s17, 3
      %p170 = pnand %p168, %p169
      %p171 = pneg %p170
      // Predicated region
      $region25: #{tpu_custom_call.1} parent=5 // pred_check
        _
      $region26: #{tpu_custom_call.1} parent=5 // pred_check_branch
        %173 = sbr.rel (%p170) target = $region28
      $region27: #{tpu_custom_call.1} parent=5 // pred_region
        %s174 = ssub.s32 %s17, 1
        %s175 = sand.u32 %s44, 1
        %s176 = scalar_lea.sflag [#allocation3], %s175
        %s177 = sand.u32 %s44, 1
        %s178 = smul.addr %s177, 8
        %s179 = scalar_lea.vmem [#allocation2], %s178
        // Predicated region
        $region29: #{tpu_custom_call.1} parent=27 // pred_check
          %p180 = pneg %p57
        $region30: #{tpu_custom_call.1} parent=27 // pred_check_branch
          %182 = sbr.rel (%p180) target = $region32
        $region31: #{tpu_custom_call.1} parent=27 // pred_region
          %183 = dma.done %s176, 128
        $region32: #{tpu_custom_call.1} parent=27 // pred_fallthru
          _
        %s184 = sand.u32 %s72, 1
        %s185 = scalar_lea.sflag [#allocation6], %s184
        %s186 = sand.u32 %s72, 1
        %s187 = smul.addr %s186, 4
        %s188 = scalar_lea.vmem [#allocation5], %s187
        // Predicated region
        $region33: #{tpu_custom_call.1} parent=27 // pred_check
          %p189 = pneg %p85
        $region34: #{tpu_custom_call.1} parent=27 // pred_check_branch
          %191 = sbr.rel (%p189) target = $region36
        $region35: #{tpu_custom_call.1} parent=27 // pred_region
          %192 = dma.done %s185, 64
        $region36: #{tpu_custom_call.1} parent=27 // pred_fallthru
          _
        %s193 = sand.u32 %s44, 1
        %s194 = scalar_lea.sflag [#allocation3], %s193
        %s195 = sand.u32 %s44, 1
        %s196 = smul.addr %s195, 8
        %s197 = scalar_lea.vmem [#allocation2], %s196
        %p198 = pneg %p57
        %p199 = pneg %p54
        %s200 = sand.u32 %s72, 1
        %s201 = scalar_lea.sflag [#allocation6], %s200
        %s202 = sand.u32 %s72, 1
        %s203 = smul.addr %s202, 4
        %s204 = scalar_lea.vmem [#allocation5], %s203
        %p205 = pneg %p85
        %p206 = pneg %p82
        %p207 = pneg %p111
        %p208 = pneg %p108
        %s209 = sand.u32 %s98, 1
        %s210 = scalar_lea.sflag [#allocation4], %s209
        %s211 = sand.u32 %s98, 1
        %s212 = smul.addr %s211, 8
        %s213 = scalar_lea.vmem [#allocation7], %s212
        %s214 = sadd.s32 %s26, %s27
        %s215 = sadd.s32 %s26, %s27
        %p216 = scmp.eq.s32.totalorder %s27, 0
        // Predicated region
        $region37: #{tpu_custom_call.1} parent=27 // pred_check
          %p217 = pneg %p216
        $region38: #{tpu_custom_call.1} parent=27 // pred_check_branch
          %219 = sbr.rel (%p217) target = $region40
        $region39: #{tpu_custom_call.1} parent=27 // pred_region
          %220 = vst [vmem:[%s213] sm:$0xff] 0.0
        $region40: #{tpu_custom_call.1} parent=27 // pred_fallthru
          _
        %v221 = vld [vmem:[%s179] sm:$0xff]
        %v222 = vld [vmem:[%s188] sm:$0xf]
        %v223 = vunpack.c.l.bf16 %v222
        %v224 = vmax.f32 %v221, 0.0
        %v225 = vmul.f32 %v223, %v221
        %v226 = vsub.f32 %v224, %v225
        %v227 = vand.u32 2147483647, %v221
        %v228 = vsub.f32 0.0, %v227
        %v229 = vmul.f32 %v228, 1.442695
        %v230 = vpow.pop %v229
        %v231 = vadd.f32 %v230, 1.0
        %v232 = vlog2.pop %v231
        %v233 = vmul.f32 %v232, 0.6931472
        %v234 = vadd.f32 %v226, %v233
        %v235 = vld [vmem:[%s213] sm:$0xff]
        %v236 = vadd.f32 %v234, 0.0
        %v237 = vadd.f32 %v235, %v236
        %238 = vst [vmem:[%s213] sm:$0xff] %v237
        %s239 = sand.u32 %s98, 1
        %s240 = scalar_lea.sflag [#allocation4], %s239
        %s241 = sand.u32 %s98, 1
        %s242 = smul.addr %s241, 8
        %s243 = scalar_lea.vmem [#allocation7], %s242
        // Predicated region
        $region41: #{tpu_custom_call.1} parent=27 // pred_check
          %p244 = pneg %p108
        $region42: #{tpu_custom_call.1} parent=27 // pred_check_branch
          %246 = sbr.rel (%p244) target = $region44
        $region43: #{tpu_custom_call.1} parent=27 // pred_region
          %s248 = ssub.s32 128, 128
          %249 = vsyncadd %s240, %s248
          %s250 = smul.addr %s26, 128
          %s251 = scalar_lea.hbm %s2, %s250
          %s253 = sshll.u32 %s243, 4
          %s254 = int_to_ptr.vmem [resolvable:$true] %s253
          %256 = dma.vmem_to_hbm [thread:$0]  %s254, 128, %s251, %s240
        $region44: #{tpu_custom_call.1} parent=27 // pred_fallthru
          _
      $region28: #{tpu_custom_call.1} parent=5 // pred_fallthru
        _
      %p257 = scmp.le.s32.totalorder 2, %s17
      // Predicated region
      $region45: #{tpu_custom_call.1} parent=5 // pred_check
        %p258 = pneg %p257
      $region46: #{tpu_custom_call.1} parent=5 // pred_check_branch
        %260 = sbr.rel (%p258) target = $region48
      $region47: #{tpu_custom_call.1} parent=5 // pred_region
        %s261 = ssub.s32 %s17, 2
        // Predicated region
        $region49: #{tpu_custom_call.1} parent=47 // pred_check
          %p262 = pneg %p114
        $region50: #{tpu_custom_call.1} parent=47 // pred_check_branch
          %264 = sbr.rel (%p262) target = $region52
        $region51: #{tpu_custom_call.1} parent=47 // pred_region
          %s265 = sand.u32 %s99, 1
          %s266 = scalar_lea.sflag [#allocation4], %s265
          %s267 = sand.u32 %s99, 1
          %s268 = smul.addr %s267, 8
          %s269 = scalar_lea.vmem [#allocation7], %s268
          %270 = dma.done %s266, 128
        $region52: #{tpu_custom_call.1} parent=47 // pred_fallthru
          _
      $region48: #{tpu_custom_call.1} parent=5 // pred_fallthru
        _
    $region6: #{tpu_custom_call.1} parent=1 // loop_footer
      %s21 = sadd.s32 1, %s17
    $region7: #{tpu_custom_call.1} parent=1 // loop_footer_branch
      %16 = sbr.rel target = $region3
    $region8: #{tpu_custom_call.1} parent=1 // loop_exit
      _
    %271 = vsyncpa [#allocation3], 1
    %s272 = scalar_lea.sflag [#allocation3], 1
    %273 = vsyncpa %s272, 1
    %274 = vsyncpa [#allocation6], 1
    %s275 = scalar_lea.sflag [#allocation6], 1
    %276 = vsyncpa %s275, 1
    %277 = vsyncpa [#allocation4], 1
    %s278 = scalar_lea.sflag [#allocation4], 1
    %279 = vsyncpa %s278, 1

</llo_original>
